<compile_context>
chip_gen: v5e
topology: v5e:2x2
jax: 0.10.0
libtpu: 0.0.40
codegen_flags: <defaults>
</compile_context>

<pallas_src>
import jax
import jax.numpy as jnp
from jax.experimental import pallas as pl
from jax.experimental.pallas import tpu as pltpu

FEATURE_DIM   = 16
RNN_LAYER_DIM = 32     # config.rnn_layer_dim
RNN_LAYER_NUM = 2      # config.rnn_layer_num
BIDIRECTIONAL = False  # config.bidrectional
DROPOUT_RATE  = 0.1    # config.dropout_rate (identity in eval/inference mode)
LANE          = 128    # TPU lane width; hidden / gate / feature dims are padded to this


# ------------------------------ fused kernel ---------------------------------
def fused_gru_regressor_kernel(seq_ref, w0_ref, b0_ref, w1_ref, b1_ref,
                               wl_ref, bl_ref, out_ref):
    """Entire model in one invocation.

    seq_ref : (T, B, LANE)        input, feature dim zero-padded to LANE
    wX_ref  : (2*LANE, 4*LANE)    block GRU weight, layer X:
                                    rows [0:LANE)      <- h_prev (first H real)
                                    rows [LANE:2LANE)  <- layer input (first F/H real)
                                    cols group 0 -> r pre-act (x+h summed)
                                    cols group 1 -> z pre-act (x+h summed)
                                    cols group 2 -> n gate, input part
                                    cols group 3 -> n gate, hidden part
    bX_ref  : (1, 4*LANE)         matching biases (r/z biases pre-summed)
    wl_ref  : (1, LANE)           Linear weight, zero-padded
    bl_ref  : (1, 1)              Linear bias
    out_ref : (1, 1)              final scalar (== x[:, -1, :].item())
    """
    T, B, HP = seq_ref.shape
    NG = 4 * HP

    w0 = w0_ref[...]
    w1 = w1_ref[...]
    # Hoist bias broadcasts out of the timestep loop (JAX does not CSE them).
    b0 = jnp.broadcast_to(b0_ref[...], (B, NG))
    b1 = jnp.broadcast_to(b1_ref[...], (B, NG))

    def gru_cell(h_prev, x_in, w, b):
        # Single MXU matmul per layer per step; gate slices land exactly on
        # 128-lane group boundaries (no intra-vreg lane shuffles).
        # Padded lanes of h stay 0 across steps (zero weight cols / biases).
        a = jnp.concatenate([h_prev, x_in], axis=-1)                 # (B, 2*HP)
        g = jnp.dot(a, w, preferred_element_type=jnp.float32) + b    # (B, 4*HP)
        r = jax.nn.sigmoid(g[:, 0 * HP:1 * HP])
        z = jax.nn.sigmoid(g[:, 1 * HP:2 * HP])
        n = jnp.tanh(g[:, 2 * HP:3 * HP] + r * g[:, 3 * HP:4 * HP])
        return (1.0 - z) * n + z * h_prev

    def step(t, carry):
        h0, h1 = carry
        x_t = seq_ref[t]                                             # (B, HP)
        h0 = gru_cell(h0, x_t, w0, b0)                               # layer 0
        h1 = gru_cell(h1, h0, w1, b1)                                # layer 1
        return (h0, h1)

    h_init = jnp.zeros((B, HP), jnp.float32)                         # PyTorch h0 = 0
    _, h1 = jax.lax.fori_loop(0, T, step, (h_init, h_init), unroll=True)

    # nn.Dropout: identity in eval mode.
    # TODO(synk): training-mode dropout would need pltpu.prng_seed/prng_random_bits.
    # Linear + x[:, -1, :]: only batch row B-1 of the last timestep is ever used,
    # so compute just that scalar with a VPU multiply + lane reduce (no MXU).
    h_last = h1[B - 1:B, :]                                          # (1, HP)
    y = jnp.sum(h_last * wl_ref[...], axis=-1, keepdims=True) + bl_ref[...]
    out_ref[...] = y


# --------------------------- trace-time weight packing ------------------------
def _pack_gru_layer(w_ih, w_hh, b_ih, b_hh):
    """PyTorch GRU params (gate order [r, z, n]) -> one block matmul weight/bias.

    w_ih: (3H, in_dim)  w_hh: (3H, H)  b_ih, b_hh: (3H,)
    Returns W: (2*LANE, 4*LANE), b: (1, 4*LANE), float32, zero-padded.
    """
    three_h, in_dim = w_ih.shape
    H = three_h // 3
    wih_t = jnp.transpose(w_ih).astype(jnp.float32)   # (in_dim, 3H)
    whh_t = jnp.transpose(w_hh).astype(jnp.float32)   # (H, 3H)
    b_ih = b_ih.astype(jnp.float32)
    b_hh = b_hh.astype(jnp.float32)

    W = jnp.zeros((2 * LANE, 4 * LANE), jnp.float32)
    # r gate (input + hidden contributions summed by the matmul)
    W = W.at[0:H, 0:H].set(whh_t[:, 0:H])
    W = W.at[LANE:LANE + in_dim, 0:H].set(wih_t[:, 0:H])
    # z gate
    W = W.at[0:H, LANE:LANE + H].set(whh_t[:, H:2 * H])
    W = W.at[LANE:LANE + in_dim, LANE:LANE + H].set(wih_t[:, H:2 * H])
    # n gate, input part (x rows only)
    W = W.at[LANE:LANE + in_dim, 2 * LANE:2 * LANE + H].set(wih_t[:, 2 * H:3 * H])
    # n gate, hidden part (h rows only)
    W = W.at[0:H, 3 * LANE:3 * LANE + H].set(whh_t[:, 2 * H:3 * H])

    b = jnp.zeros((1, 4 * LANE), jnp.float32)
    b = b.at[0, 0:H].set(b_ih[0:H] + b_hh[0:H])                     # r (folded)
    b = b.at[0, LANE:LANE + H].set(b_ih[H:2 * H] + b_hh[H:2 * H])   # z (folded)
    b = b.at[0, 2 * LANE:2 * LANE + H].set(b_ih[2 * H:3 * H])       # n, input part
    b = b.at[0, 3 * LANE:3 * LANE + H].set(b_hh[2 * H:3 * H])       # n, hidden part
    return W, b


# --------------------------------- forward ------------------------------------
def forward(seq, params):
    """seq: (T, B, F), batch_first=False semantics.  Returns a 0-d array,
    mimicking `self.linear(self.dropout(self.rnn(seq)[0]))[:, -1, :].item()`."""
    seq = seq.astype(jnp.float32)
    T, B, F = seq.shape
    H = params["gru"][0]["w_hh"].shape[1]
    assert len(params["gru"]) == 2, "kernel is specialized to rnn_layer_num == 2"
    assert F <= LANE and H <= LANE
    # .item() requires a single element: x[:, -1, :] is (T, 1), so T must be 1.
    assert T == 1, ".item() in the original module requires T == 1"

    seq_pad = jnp.pad(seq, ((0, 0), (0, 0), (0, LANE - F)))
    w0, b0 = _pack_gru_layer(**params["gru"][0])
    w1, b1 = _pack_gru_layer(**params["gru"][1])
    wl = jnp.pad(params["linear"]["w"].astype(jnp.float32), ((0, 0), (0, LANE - H)))
    bl = params["linear"]["b"].reshape(1, 1).astype(jnp.float32)

    out = pl.pallas_call(
        fused_gru_regressor_kernel,
        out_shape=jax.ShapeDtypeStruct((1, 1), jnp.float32),
        grid_spec=pltpu.PrefetchScalarGridSpec(
            num_scalar_prefetch=0,
            grid=(1,),                                  # single invocation; time loop is in-kernel
            in_specs=[
                pl.BlockSpec((T, B, LANE), lambda i: (0, 0, 0)),          # full sequence in VMEM
                pl.BlockSpec((2 * LANE, 4 * LANE), lambda i: (0, 0)),     # W0 (resident)
                pl.BlockSpec((1, 4 * LANE), lambda i: (0, 0)),            # b0
                pl.BlockSpec((2 * LANE, 4 * LANE), lambda i: (0, 0)),     # W1 (resident)
                pl.BlockSpec((1, 4 * LANE), lambda i: (0, 0)),            # b1
                pl.BlockSpec((1, LANE), lambda i: (0, 0)),                # linear weight
                pl.BlockSpec((1, 1), lambda i: (0, 0)),                   # linear bias
            ],
            out_specs=pl.BlockSpec((1, 1), lambda i: (0, 0)),
        ),
        compiler_params=pltpu.CompilerParams(
            dimension_semantics=("arbitrary",)),
    )(seq_pad, w0, b0, w1, b1, wl, bl)
    return out.reshape(())


# --------------------------- parameter construction ---------------------------
def init_params(key, feature_dim, hidden_dim, num_layers):
    """Deterministic init matching PyTorch GRU/Linear parameter shapes
       (uniform(-1/sqrt(H), 1/sqrt(H)), like PyTorch's default)."""
    params = {"gru": [], "linear": {}}
    bound = 1.0 / jnp.sqrt(jnp.float32(hidden_dim))
    for layer in range(num_layers):
        in_dim = feature_dim if layer == 0 else hidden_dim
        key, k1, k2, k3, k4 = jax.random.split(key, 5)
        params["gru"].append({
            "w_ih": jax.random.uniform(k1, (3 * hidden_dim, in_dim), jnp.float32, -bound, bound),
            "w_hh": jax.random.uniform(k2, (3 * hidden_dim, hidden_dim), jnp.float32, -bound, bound),
            "b_ih": jax.random.uniform(k3, (3 * hidden_dim,), jnp.float32, -bound, bound),
            "b_hh": jax.random.uniform(k4, (3 * hidden_dim,), jnp.float32, -bound, bound),
        })
    key, k1, k2 = jax.random.split(key, 3)
    params["linear"]["w"] = jax.random.uniform(k1, (1, hidden_dim), jnp.float32, -bound, bound)
    params["linear"]["b"] = jax.random.uniform(k2, (1,), jnp.float32, -bound, bound)
    return params


# ----------------------------- pure-JAX reference ------------------------------
def ref_forward(seq, params):
    """Straightforward (unfused) GRU -> Linear reference for correctness check."""
    x = seq.astype(jnp.float32)
    T, B, _ = x.shape
    for lp in params["gru"]:
        H = lp["w_hh"].shape[1]
        h = jnp.zeros((B, H), jnp.float32)
        outs = []
        for t in range(T):
            gi = x[t] @ lp["w_ih"].T + lp["b_ih"]
            gh = h @ lp["w_hh"].T + lp["b_hh"]
            r = jax.nn.sigmoid(gi[:, 0:H] + gh[:, 0:H])
            z = jax.nn.sigmoid(gi[:, H:2 * H] + gh[:, H:2 * H])
            n = jnp.tanh(gi[:, 2 * H:3 * H] + r * gh[:, 2 * H:3 * H])
            h = (1.0 - z) * n + z * h
            outs.append(h)
        x = jnp.stack(outs, axis=0)
    y = x @ params["linear"]["w"].T + params["linear"]["b"]   # (T, B, 1)
    return y[:, -1, :].reshape(())                            # T == 1


if __name__ == "__main__":
    key = jax.random.PRNGKey(0)
    kp, kx = jax.random.split(key)

    params = init_params(kp, FEATURE_DIM, RNN_LAYER_DIM, RNN_LAYER_NUM)

    # Input consistent with the module's forward (`x[:, -1, :].item()` needs T == 1):
    # seq of shape (T=1, B=8, F=16), batch_first=False layout.
    seq = jax.random.normal(kx, (1, 8, FEATURE_DIM), jnp.float32)

    out = forward(seq, params)
    out = jax.block_until_ready(out)
    ref = ref_forward(seq, params)

    assert out.shape == () and bool(jnp.isfinite(out))
    assert jnp.allclose(out, ref, atol=5e-3, rtol=5e-3), (float(out), float(ref))
    print("KERNEL_OK")
</pallas_src>

<mosaic_0001>
module attributes {stable_mosaic.version = 11 : i64} {
  func.func @fused_gru_regressor_kernel(%arg0: i32, %arg1: memref<1x8x128xf32, #tpu.memory_space<vmem>>, %arg2: memref<256x512xf32, #tpu.memory_space<vmem>>, %arg3: memref<1x512xf32, #tpu.memory_space<vmem>>, %arg4: memref<256x512xf32, #tpu.memory_space<vmem>>, %arg5: memref<1x512xf32, #tpu.memory_space<vmem>>, %arg6: memref<1x128xf32, #tpu.memory_space<vmem>>, %arg7: memref<1x1xf32, #tpu.memory_space<vmem>>, %arg8: memref<1x1xf32, #tpu.memory_space<vmem>>) attributes {dimension_semantics = [#tpu.dimension_semantics<arbitrary>], iteration_bounds = array<i64: 1>, scalar_prefetch = 0 : i64, scratch_operands = 0 : i64, tpu.core_type = #tpu.core_type<tc>, window_params = [{pipeline_mode = #tpu.pipeline_mode<synchronous>, transform_indices = @transform_0, window_bounds = array<i64: 1, 8, 128>}, {pipeline_mode = #tpu.pipeline_mode<synchronous>, transform_indices = @transform_1, window_bounds = array<i64: 256, 512>}, {pipeline_mode = #tpu.pipeline_mode<synchronous>, transform_indices = @transform_2, window_bounds = array<i64: 1, 512>}, {pipeline_mode = #tpu.pipeline_mode<synchronous>, transform_indices = @transform_3, window_bounds = array<i64: 256, 512>}, {pipeline_mode = #tpu.pipeline_mode<synchronous>, transform_indices = @transform_4, window_bounds = array<i64: 1, 512>}, {pipeline_mode = #tpu.pipeline_mode<synchronous>, transform_indices = @transform_5, window_bounds = array<i64: 1, 128>}, {pipeline_mode = #tpu.pipeline_mode<synchronous>, transform_indices = @transform_6, window_bounds = array<i64: 1, 1>}, {pipeline_mode = #tpu.pipeline_mode<synchronous>, transform_indices = @transform_7, window_bounds = array<i64: 1, 1>}]} {
    %c0 = arith.constant 0 : index
    %c0_0 = arith.constant 0 : index
    %0 = vector.load %arg2[%c0, %c0_0] : memref<256x512xf32, #tpu.memory_space<vmem>>, vector<256x512xf32>
    %c0_1 = arith.constant 0 : index
    %c0_2 = arith.constant 0 : index
    %1 = vector.load %arg4[%c0_1, %c0_2] : memref<256x512xf32, #tpu.memory_space<vmem>>, vector<256x512xf32>
    %c0_3 = arith.constant 0 : index
    %c0_4 = arith.constant 0 : index
    %2 = vector.load %arg3[%c0_3, %c0_4] : memref<1x512xf32, #tpu.memory_space<vmem>>, vector<1x512xf32>
    %3 = vector.shape_cast %2 : vector<1x512xf32> to vector<1x512xf32>
    %4 = vector.broadcast %3 : vector<1x512xf32> to vector<8x512xf32>
    %c0_5 = arith.constant 0 : index
    %c0_6 = arith.constant 0 : index
    %5 = vector.load %arg5[%c0_5, %c0_6] : memref<1x512xf32, #tpu.memory_space<vmem>>, vector<1x512xf32>
    %6 = vector.shape_cast %5 : vector<1x512xf32> to vector<1x512xf32>
    %7 = vector.broadcast %6 : vector<1x512xf32> to vector<8x512xf32>
    %cst = arith.constant 0.000000e+00 : f32
    %8 = vector.broadcast %cst : f32 to vector<8x128xf32>
    %c0_i32 = arith.constant 0 : i32
    %9 = arith.index_cast %c0_i32 : i32 to index
    %c0_7 = arith.constant 0 : index
    %c0_8 = arith.constant 0 : index
    %10 = vector.load %arg1[%9, %c0_7, %c0_8] : memref<1x8x128xf32, #tpu.memory_space<vmem>>, vector<1x8x128xf32>
    %11 = vector.shape_cast %10 : vector<1x8x128xf32> to vector<8x128xf32>
    %12 = tpu.concatenate %8, %11 in 1 : vector<8x128xf32>, vector<8x128xf32> -> vector<8x256xf32>
    %cst_9 = arith.constant dense<0.000000e+00> : vector<8x512xf32>
    %13 = tpu.matmul %12, %0, %cst_9 {dimension_numbers = #tpu.dot_dimension_numbers<[1], [0], [0], [1], [0, 0, 1, 1], [], []>} : vector<8x256xf32>, vector<256x512xf32>, vector<8x512xf32> -> vector<8x512xf32>
    %14 = arith.addf %13, %4 : vector<8x512xf32>
    %15 = vector.extract_strided_slice %14 {offsets = [0, 0], sizes = [8, 128], strides = [1, 1]} : vector<8x512xf32> to vector<8x128xf32>
    %16 = arith.negf %15 : vector<8x128xf32>
    %17 = math.exp %16 : vector<8x128xf32>
    %cst_10 = arith.constant 1.000000e+00 : f32
    %18 = vector.broadcast %cst_10 : f32 to vector<8x128xf32>
    %19 = arith.addf %18, %17 : vector<8x128xf32>
    %20 = arith.divf %18, %19 : vector<8x128xf32>
    %21 = vector.extract_strided_slice %14 {offsets = [0, 128], sizes = [8, 128], strides = [1, 1]} : vector<8x512xf32> to vector<8x128xf32>
    %22 = arith.negf %21 : vector<8x128xf32>
    %23 = math.exp %22 : vector<8x128xf32>
    %cst_11 = arith.constant 1.000000e+00 : f32
    %24 = vector.broadcast %cst_11 : f32 to vector<8x128xf32>
    %25 = arith.addf %24, %23 : vector<8x128xf32>
    %26 = arith.divf %24, %25 : vector<8x128xf32>
    %27 = vector.extract_strided_slice %14 {offsets = [0, 256], sizes = [8, 128], strides = [1, 1]} : vector<8x512xf32> to vector<8x128xf32>
    %28 = vector.extract_strided_slice %14 {offsets = [0, 384], sizes = [8, 128], strides = [1, 1]} : vector<8x512xf32> to vector<8x128xf32>
    %29 = arith.mulf %20, %28 : vector<8x128xf32>
    %30 = arith.addf %27, %29 : vector<8x128xf32>
    %31 = math.tanh %30 : vector<8x128xf32>
    %cst_12 = arith.constant 1.000000e+00 : f32
    %32 = vector.broadcast %cst_12 : f32 to vector<8x128xf32>
    %33 = arith.subf %32, %26 : vector<8x128xf32>
    %34 = arith.mulf %33, %31 : vector<8x128xf32>
    %35 = arith.mulf %26, %8 : vector<8x128xf32>
    %36 = arith.addf %34, %35 : vector<8x128xf32>
    %37 = tpu.concatenate %8, %36 in 1 : vector<8x128xf32>, vector<8x128xf32> -> vector<8x256xf32>
    %cst_13 = arith.constant dense<0.000000e+00> : vector<8x512xf32>
    %38 = tpu.matmul %37, %1, %cst_13 {dimension_numbers = #tpu.dot_dimension_numbers<[1], [0], [0], [1], [0, 0, 1, 1], [], []>} : vector<8x256xf32>, vector<256x512xf32>, vector<8x512xf32> -> vector<8x512xf32>
    %39 = arith.addf %38, %7 : vector<8x512xf32>
    %40 = vector.extract_strided_slice %39 {offsets = [0, 0], sizes = [8, 128], strides = [1, 1]} : vector<8x512xf32> to vector<8x128xf32>
    %41 = arith.negf %40 : vector<8x128xf32>
    %42 = math.exp %41 : vector<8x128xf32>
    %cst_14 = arith.constant 1.000000e+00 : f32
    %43 = vector.broadcast %cst_14 : f32 to vector<8x128xf32>
    %44 = arith.addf %43, %42 : vector<8x128xf32>
    %45 = arith.divf %43, %44 : vector<8x128xf32>
    %46 = vector.extract_strided_slice %39 {offsets = [0, 128], sizes = [8, 128], strides = [1, 1]} : vector<8x512xf32> to vector<8x128xf32>
    %47 = arith.negf %46 : vector<8x128xf32>
    %48 = math.exp %47 : vector<8x128xf32>
    %cst_15 = arith.constant 1.000000e+00 : f32
    %49 = vector.broadcast %cst_15 : f32 to vector<8x128xf32>
    %50 = arith.addf %49, %48 : vector<8x128xf32>
    %51 = arith.divf %49, %50 : vector<8x128xf32>
    %52 = vector.extract_strided_slice %39 {offsets = [0, 256], sizes = [8, 128], strides = [1, 1]} : vector<8x512xf32> to vector<8x128xf32>
    %53 = vector.extract_strided_slice %39 {offsets = [0, 384], sizes = [8, 128], strides = [1, 1]} : vector<8x512xf32> to vector<8x128xf32>
    %54 = arith.mulf %45, %53 : vector<8x128xf32>
    %55 = arith.addf %52, %54 : vector<8x128xf32>
    %56 = math.tanh %55 : vector<8x128xf32>
    %cst_16 = arith.constant 1.000000e+00 : f32
    %57 = vector.broadcast %cst_16 : f32 to vector<8x128xf32>
    %58 = arith.subf %57, %51 : vector<8x128xf32>
    %59 = arith.mulf %58, %56 : vector<8x128xf32>
    %60 = arith.mulf %51, %8 : vector<8x128xf32>
    %61 = arith.addf %59, %60 : vector<8x128xf32>
    %c1_i32 = arith.constant 1 : i32
    %62 = vector.extract_strided_slice %61 {offsets = [7, 0], sizes = [1, 128], strides = [1, 1]} : vector<8x128xf32> to vector<1x128xf32>
    %c0_17 = arith.constant 0 : index
    %c0_18 = arith.constant 0 : index
    %63 = vector.load %arg6[%c0_17, %c0_18] : memref<1x128xf32, #tpu.memory_space<vmem>>, vector<1x128xf32>
    %64 = arith.mulf %62, %63 : vector<1x128xf32>
    %cst_19 = arith.constant dense<0.000000e+00> : vector<1xf32>
    %65 = vector.multi_reduction <add>, %64, %cst_19 [1] : vector<1x128xf32> to vector<1xf32>
    %66 = vector.shape_cast %65 : vector<1xf32> to vector<1x1xf32>
    %c0_20 = arith.constant 0 : index
    %c0_21 = arith.constant 0 : index
    %67 = vector.load %arg7[%c0_20, %c0_21] : memref<1x1xf32, #tpu.memory_space<vmem>>, vector<1x1xf32>
    %68 = arith.addf %66, %67 : vector<1x1xf32>
    %c0_22 = arith.constant 0 : index
    %c0_23 = arith.constant 0 : index
    %69 = vector.load %arg8[%c0_22, %c0_23] : memref<1x1xf32, #tpu.memory_space<vmem>>, vector<1x1xf32>
    tpu.vector_store %arg8[%c0_22, %c0_23], %68 {strides = array<i32>} : memref<1x1xf32, #tpu.memory_space<vmem>>, vector<1x1xf32>,
    return
  }
  func.func @transform_0(%arg0: i32) -> (i32, i32, i32) {
    %c0_i32 = arith.constant 0 : i32
    %c0_i32_0 = arith.constant 0 : i32
    %c0_i32_1 = arith.constant 0 : i32
    %c0_i32_2 = arith.constant 0 : i32
    return %c0_i32, %c0_i32_0, %c0_i32_1 : i32, i32, i32
  }
  func.func @transform_1(%arg0: i32) -> (i32, i32) {
    %c0_i32 = arith.constant 0 : i32
    %c0_i32_0 = arith.constant 0 : i32
    %c0_i32_1 = arith.constant 0 : i32
    return %c0_i32, %c0_i32_0 : i32, i32
  }
  func.func @transform_2(%arg0: i32) -> (i32, i32) {
    %c0_i32 = arith.constant 0 : i32
    %c0_i32_0 = arith.constant 0 : i32
    %c0_i32_1 = arith.constant 0 : i32
    return %c0_i32, %c0_i32_0 : i32, i32
  }
  func.func @transform_3(%arg0: i32) -> (i32, i32) {
    %c0_i32 = arith.constant 0 : i32
    %c0_i32_0 = arith.constant 0 : i32
    %c0_i32_1 = arith.constant 0 : i32
    return %c0_i32, %c0_i32_0 : i32, i32
  }
  func.func @transform_4(%arg0: i32) -> (i32, i32) {
    %c0_i32 = arith.constant 0 : i32
    %c0_i32_0 = arith.constant 0 : i32
    %c0_i32_1 = arith.constant 0 : i32
    return %c0_i32, %c0_i32_0 : i32, i32
  }
  func.func @transform_5(%arg0: i32) -> (i32, i32) {
    %c0_i32 = arith.constant 0 : i32
    %c0_i32_0 = arith.constant 0 : i32
    %c0_i32_1 = arith.constant 0 : i32
    return %c0_i32, %c0_i32_0 : i32, i32
  }
  func.func @transform_6(%arg0: i32) -> (i32, i32) {
    %c0_i32 = arith.constant 0 : i32
    %c0_i32_0 = arith.constant 0 : i32
    %c0_i32_1 = arith.constant 0 : i32
    return %c0_i32, %c0_i32_0 : i32, i32
  }
  func.func @transform_7(%arg0: i32) -> (i32, i32) {
    %c0_i32 = arith.constant 0 : i32
    %c0_i32_0 = arith.constant 0 : i32
    %c0_i32_1 = arith.constant 0 : i32
    return %c0_i32, %c0_i32_0 : i32, i32
  }
}

</mosaic_0001>

<llo_original>
// kernel: tpu_custom_call.1
$region0: #{tpu_custom_call.1}
  #allocation0 [shape = 'u32[]', space=smem, size = 0x4, offset = 0x4, fixed_abs, tag = 'smem constant byte address 0x4 - core index']
  #allocation1 [shape = 'u32[72,128]{1,0:T(1,128)}', space=vmem, size = 0x9000, scoped, tag = 'internal scratch']
  #allocation2 [shape = 'f32[1,1]{1,0:T(1,128)S(1)}', space=vmem, size = 0x200, scoped, tag = 'scoped memory for tpu_custom_call.1']
  %s0 = inlined_call_operand.hbm [shape: f32[1,8,128], index: 0, kind: input, shape index: {}]
  %s1 = inlined_call_operand.hbm [shape: f32[256,512], index: 1, kind: input, shape index: {}]
  %s2 = inlined_call_operand.hbm [shape: f32[1,512], index: 2, kind: input, shape index: {}]
  %s3 = inlined_call_operand.hbm [shape: f32[256,512], index: 3, kind: input, shape index: {}]
  %s4 = inlined_call_operand.vmem [shape: f32[1,512], index: 4, kind: input, shape index: {}]
  %s5 = inlined_call_operand.vmem [shape: f32[1,128], index: 5, kind: input, shape index: {}]
  %s6 = inlined_call_operand.<no memory space> [shape: f32[1,1], index: 6, kind: input, shape index: {}]
  %s7 = inlined_call_operand.hbm [shape: f32[1,1], index: 7, kind: output, shape index: {}]
  %s8 = sld [smem:[#allocation0]]
  $region54: #{tpu_custom_call.1} parent=0
    _
  %s10 = ssub.s32 1, %s8
  %s11 = scalar_select 0, %s10, %s8
  %v12 = vstv %s6
  %13 = vst [vmem:[#allocation2] sm:$0x1] %v12
  $region1: #{tpu_custom_call.1} parent=0
    #allocation3 [shape = 'u8[4096]{0}', space=vmem, size = 0x1000, scoped, tag = 'input window, operand 0, single buffered']
    #allocation4 [shape = 's32[1]{0}', space=sflag, size = 0x4, scoped, tag = 'scoped memory for tpu_custom_call.1']
    #allocation5 [shape = 's32[1]{0}', space=sflag, size = 0x4, scoped, tag = 'scoped memory for tpu_custom_call.1']
    #allocation6 [shape = 'u8[524288]{0}', space=vmem, size = 0x80000, scoped, tag = 'input window, operand 1, single buffered']
    #allocation7 [shape = 's32[1]{0}', space=sflag, size = 0x4, scoped, tag = 'scoped memory for tpu_custom_call.1']
    #allocation8 [shape = 'u8[2048]{0}', space=vmem, size = 0x800, scoped, tag = 'input window, operand 2, single buffered']
    #allocation9 [shape = 'u8[524288]{0}', space=vmem, size = 0x80000, scoped, tag = 'input window, operand 3, single buffered']
    #allocation10 [shape = 's32[1]{0}', space=sflag, size = 0x4, scoped, tag = 'scoped memory for tpu_custom_call.1']
    #allocation11 [shape = 'u8[512]{0}', space=vmem, size = 0x400, scoped, tag = 'output window, operand 0, single buffered']
    %14 = vsyncpa [#allocation4], 0
    %15 = vsyncpa [#allocation7], 0
    %16 = vsyncpa [#allocation10], 0
    %17 = vsyncpa [#allocation5], 0
    // Predicated region
    $region2: #{tpu_custom_call.1} parent=1 // pred_check
      _
    $region3: #{tpu_custom_call.1} parent=1 // pred_check_branch
      %19 = sbr.rel (0) target = $region5
    $region4: #{tpu_custom_call.1} parent=1 // pred_region
      %21 = vsyncadd [#allocation4], 0
      %s23 = sshll.u32 %s0, 4
      %s24 = int_to_ptr.hbm [resolvable:$true] %s23
      %s25 = sshll.u32 [#allocation3], 4
      %s26 = int_to_ptr.vmem [resolvable:$true] %s25
      %28 = dma.hbm_to_vmem [thread:$0]  %s24, 128, %s26, [#allocation4]
    $region5: #{tpu_custom_call.1} parent=1 // pred_fallthru
      _
    // Predicated region
    $region6: #{tpu_custom_call.1} parent=1 // pred_check
      _
    $region7: #{tpu_custom_call.1} parent=1 // pred_check_branch
      %30 = sbr.rel (0) target = $region9
    $region8: #{tpu_custom_call.1} parent=1 // pred_region
      %32 = vsyncadd [#allocation7], 0
      %s33 = sshll.u32 %s1, 4
      %s34 = int_to_ptr.hbm [resolvable:$true] %s33
      %s35 = sshll.u32 [#allocation6], 4
      %s36 = int_to_ptr.vmem [resolvable:$true] %s35
      %41 = dma.hbm_to_vmem [thread:$0]  %s34, 16384, %s36, [#allocation7], 512, 512, 32
    $region9: #{tpu_custom_call.1} parent=1 // pred_fallthru
      _
    // Predicated region
    $region10: #{tpu_custom_call.1} parent=1 // pred_check
      _
    $region11: #{tpu_custom_call.1} parent=1 // pred_check_branch
      %43 = sbr.rel (0) target = $region13
    $region12: #{tpu_custom_call.1} parent=1 // pred_region
      %45 = vsyncadd [#allocation7], 0
      %s47 = sshll.u32 %s2, 4
      %s48 = int_to_ptr.hbm [resolvable:$true] %s47
      %s49 = sshll.u32 [#allocation8], 4
      %s50 = int_to_ptr.vmem [resolvable:$true] %s49
      %52 = dma.hbm_to_vmem [thread:$0]  %s48, 64, %s50, [#allocation7]
    $region13: #{tpu_custom_call.1} parent=1 // pred_fallthru
      _
    // Predicated region
    $region14: #{tpu_custom_call.1} parent=1 // pred_check
      _
    $region15: #{tpu_custom_call.1} parent=1 // pred_check_branch
      %54 = sbr.rel (0) target = $region17
    $region16: #{tpu_custom_call.1} parent=1 // pred_region
      %56 = vsyncadd [#allocation10], 0
      %s57 = sshll.u32 %s3, 4
      %s58 = int_to_ptr.hbm [resolvable:$true] %s57
      %s59 = sshll.u32 [#allocation9], 4
      %s60 = int_to_ptr.vmem [resolvable:$true] %s59
      %65 = dma.hbm_to_vmem [thread:$0]  %s58, 16384, %s60, [#allocation10], 512, 512, 32
    $region17: #{tpu_custom_call.1} parent=1 // pred_fallthru
      _
    // Predicated region
    $region18: #{tpu_custom_call.1} parent=1 // pred_check
      _
    $region19: #{tpu_custom_call.1} parent=1 // pred_check_branch
      %67 = sbr.rel (0) target = $region21
    $region20: #{tpu_custom_call.1} parent=1 // pred_region
      _
    $region21: #{tpu_custom_call.1} parent=1 // pred_fallthru
      _
    // Predicated region
    $region22: #{tpu_custom_call.1} parent=1 // pred_check
      _
    $region23: #{tpu_custom_call.1} parent=1 // pred_check_branch
      %69 = sbr.rel (0) target = $region25
    $region24: #{tpu_custom_call.1} parent=1 // pred_region
      _
    $region25: #{tpu_custom_call.1} parent=1 // pred_fallthru
      _
    // Predicated region
    $region26: #{tpu_custom_call.1} parent=1 // pred_check
      _
    $region27: #{tpu_custom_call.1} parent=1 // pred_check_branch
      %71 = sbr.rel (0) target = $region29
    $region28: #{tpu_custom_call.1} parent=1 // pred_region
      _
    $region29: #{tpu_custom_call.1} parent=1 // pred_fallthru
      _
    // Predicated region
    $region30: #{tpu_custom_call.1} parent=1 // pred_check
      _
    $region31: #{tpu_custom_call.1} parent=1 // pred_check_branch
      %73 = sbr.rel (0) target = $region33
    $region32: #{tpu_custom_call.1} parent=1 // pred_region
      %75 = dma.done [#allocation4], 128
    $region33: #{tpu_custom_call.1} parent=1 // pred_fallthru
      _
    // Predicated region
    $region34: #{tpu_custom_call.1} parent=1 // pred_check
      _
    $region35: #{tpu_custom_call.1} parent=1 // pred_check_branch
      %77 = sbr.rel (0) target = $region37
    $region36: #{tpu_custom_call.1} parent=1 // pred_region
      %79 = dma.done [#allocation7], 16384
    $region37: #{tpu_custom_call.1} parent=1 // pred_fallthru
      _
    // Predicated region
    $region38: #{tpu_custom_call.1} parent=1 // pred_check
      _
    $region39: #{tpu_custom_call.1} parent=1 // pred_check_branch
      %81 = sbr.rel (0) target = $region41
    $region40: #{tpu_custom_call.1} parent=1 // pred_region
      %83 = dma.done [#allocation7], 64
    $region41: #{tpu_custom_call.1} parent=1 // pred_fallthru
      _
    // Predicated region
    $region42: #{tpu_custom_call.1} parent=1 // pred_check
      _
    $region43: #{tpu_custom_call.1} parent=1 // pred_check_branch
      %85 = sbr.rel (0) target = $region45
    $region44: #{tpu_custom_call.1} parent=1 // pred_region
      %87 = dma.done [#allocation10], 16384
    $region45: #{tpu_custom_call.1} parent=1 // pred_fallthru
      _
    %v88 = vld [vmem:[#allocation6] sm:$0xff]
    %v89 = vld [vmem:[#allocation6 + $0x8] sm:$0xff]
    %v90 = vld [vmem:[#allocation6 + $0x10] sm:$0xff]
    %v91 = vld [vmem:[#allocation6 + $0x18] sm:$0xff]
    %v92 = vld [vmem:[#allocation6 + $0x20] sm:$0xff]
    %v93 = vld [vmem:[#allocation6 + $0x28] sm:$0xff]
    %v94 = vld [vmem:[#allocation6 + $0x30] sm:$0xff]
    %v95 = vld [vmem:[#allocation6 + $0x38] sm:$0xff]
    %v96 = vld [vmem:[#allocation6 + $0x40] sm:$0xff]
    %v97 = vld [vmem:[#allocation6 + $0x48] sm:$0xff]
    %v98 = vld [vmem:[#allocation6 + $0x50] sm:$0xff]
    %v99 = vld [vmem:[#allocation6 + $0x58] sm:$0xff]
    %v100 = vld [vmem:[#allocation6 + $0x60] sm:$0xff]
    %v101 = vld [vmem:[#allocation6 + $0x68] sm:$0xff]
    %v102 = vld [vmem:[#allocation6 + $0x70] sm:$0xff]
    %v103 = vld [vmem:[#allocation6 + $0x78] sm:$0xff]
    %v104 = vld [vmem:[#allocation6 + $0x80] sm:$0xff]
    %v105 = vld [vmem:[#allocation6 + $0x88] sm:$0xff]
    %v106 = vld [vmem:[#allocation6 + $0x90] sm:$0xff]
    %v107 = vld [vmem:[#allocation6 + $0x98] sm:$0xff]
    %v108 = vld [vmem:[#allocation6 + $0xa0] sm:$0xff]
    %v109 = vld [vmem:[#allocation6 + $0xa8] sm:$0xff]
    %v110 = vld [vmem:[#allocation6 + $0xb0] sm:$0xff]
    %v111 = vld [vmem:[#allocation6 + $0xb8] sm:$0xff]
    %v112 = vld [vmem:[#allocation6 + $0xc0] sm:$0xff]
    %v113 = vld [vmem:[#allocation6 + $0xc8] sm:$0xff]
    %v114 = vld [vmem:[#allocation6 + $0xd0] sm:$0xff]
    %v115 = vld [vmem:[#allocation6 + $0xd8] sm:$0xff]
    %v116 = vld [vmem:[#allocation6 + $0xe0] sm:$0xff]
    %v117 = vld [vmem:[#allocation6 + $0xe8] sm:$0xff]
    %v118 = vld [vmem:[#allocation6 + $0xf0] sm:$0xff]
    %v119 = vld [vmem:[#allocation6 + $0xf8] sm:$0xff]
    %v120 = vld [vmem:[#allocation6 + $0x100] sm:$0xff]
    %v121 = vld [vmem:[#allocation6 + $0x108] sm:$0xff]
    %v122 = vld [vmem:[#allocation6 + $0x110] sm:$0xff]
    %v123 = vld [vmem:[#allocation6 + $0x118] sm:$0xff]
    %v124 = vld [vmem:[#allocation6 + $0x120] sm:$0xff]
    %v125 = vld [vmem:[#allocation6 + $0x128] sm:$0xff]
    %v126 = vld [vmem:[#allocation6 + $0x130] sm:$0xff]
    %v127 = vld [vmem:[#allocation6 + $0x138] sm:$0xff]
    %v128 = vld [vmem:[#allocation6 + $0x140] sm:$0xff]
    %v129 = vld [vmem:[#allocation6 + $0x148] sm:$0xff]
    %v130 = vld [vmem:[#allocation6 + $0x150] sm:$0xff]
    %v131 = vld [vmem:[#allocation6 + $0x158] sm:$0xff]
    %v132 = vld [vmem:[#allocation6 + $0x160] sm:$0xff]
    %v133 = vld [vmem:[#allocation6 + $0x168] sm:$0xff]
    %v134 = vld [vmem:[#allocation6 + $0x170] sm:$0xff]
    %v135 = vld [vmem:[#allocation6 + $0x178] sm:$0xff]
    %v136 = vld [vmem:[#allocation6 + $0x180] sm:$0xff]
    %v137 = vld [vmem:[#allocation6 + $0x188] sm:$0xff]
    %v138 = vld [vmem:[#allocation6 + $0x190] sm:$0xff]
    %v139 = vld [vmem:[#allocation6 + $0x198] sm:$0xff]
    %v140 = vld [vmem:[#allocation6 + $0x1a0] sm:$0xff]
    %v141 = vld [vmem:[#allocation6 + $0x1a8] sm:$0xff]
    %v142 = vld [vmem:[#allocation6 + $0x1b0] sm:$0xff]
    %v143 = vld [vmem:[#allocation6 + $0x1b8] sm:$0xff]
    %v144 = vld [vmem:[#allocation6 + $0x1c0] sm:$0xff]
    %v145 = vld [vmem:[#allocation6 + $0x1c8] sm:$0xff]
    %v146 = vld [vmem:[#allocation6 + $0x1d0] sm:$0xff]
    %v147 = vld [vmem:[#allocation6 + $0x1d8] sm:$0xff]
    %v148 = vld [vmem:[#allocation6 + $0x1e0] sm:$0xff]
    %v149 = vld [vmem:[#allocation6 + $0x1e8] sm:$0xff]
    %v150 = vld [vmem:[#allocation6 + $0x1f0] sm:$0xff]
    %v151 = vld [vmem:[#allocation6 + $0x1f8] sm:$0xff]
    %v152 = vld [vmem:[#allocation6 + $0x200] sm:$0xff]
    %v153 = vld [vmem:[#allocation6 + $0x208] sm:$0xff]
    %v154 = vld [vmem:[#allocation6 + $0x210] sm:$0xff]
    %v155 = vld [vmem:[#allocation6 + $0x218] sm:$0xff]
    %v156 = vld [vmem:[#allocation6 + $0x220] sm:$0xff]
    %v157 = vld [vmem:[#allocation6 + $0x228] sm:$0xff]
    %v158 = vld [vmem:[#allocation6 + $0x230] sm:$0xff]
    %v159 = vld [vmem:[#allocation6 + $0x238] sm:$0xff]
    %v160 = vld [vmem:[#allocation6 + $0x240] sm:$0xff]
    %v161 = vld [vmem:[#allocation6 + $0x248] sm:$0xff]
    %v162 = vld [vmem:[#allocation6 + $0x250] sm:$0xff]
    %v163 = vld [vmem:[#allocation6 + $0x258] sm:$0xff]
    %v164 = vld [vmem:[#allocation6 + $0x260] sm:$0xff]
    %v165 = vld [vmem:[#allocation6 + $0x268] sm:$0xff]
    %v166 = vld [vmem:[#allocation6 + $0x270] sm:$0xff]
    %v167 = vld [vmem:[#allocation6 + $0x278] sm:$0xff]
    %v168 = vld [vmem:[#allocation6 + $0x280] sm:$0xff]
    %v169 = vld [vmem:[#allocation6 + $0x288] sm:$0xff]
    %v170 = vld [vmem:[#allocation6 + $0x290] sm:$0xff]
    %v171 = vld [vmem:[#allocation6 + $0x298] sm:$0xff]
    %v172 = vld [vmem:[#allocation6 + $0x2a0] sm:$0xff]
    %v173 = vld [vmem:[#allocation6 + $0x2a8] sm:$0xff]
    %v174 = vld [vmem:[#allocation6 + $0x2b0] sm:$0xff]
    %v175 = vld [vmem:[#allocation6 + $0x2b8] sm:$0xff]
    %v176 = vld [vmem:[#allocation6 + $0x2c0] sm:$0xff]
    %v177 = vld [vmem:[#allocation6 + $0x2c8] sm:$0xff]
    %v178 = vld [vmem:[#allocation6 + $0x2d0] sm:$0xff]
    %v179 = vld [vmem:[#allocation6 + $0x2d8] sm:$0xff]
    %v180 = vld [vmem:[#allocation6 + $0x2e0] sm:$0xff]
    %v181 = vld [vmem:[#allocation6 + $0x2e8] sm:$0xff]
    %v182 = vld [vmem:[#allocation6 + $0x2f0] sm:$0xff]
    %v183 = vld [vmem:[#allocation6 + $0x2f8] sm:$0xff]
    %v184 = vld [vmem:[#allocation6 + $0x300] sm:$0xff]
    %v185 = vld [vmem:[#allocation6 + $0x308] sm:$0xff]
    %v186 = vld [vmem:[#allocation6 + $0x310] sm:$0xff]
    %v187 = vld [vmem:[#allocation6 + $0x318] sm:$0xff]
    %v188 = vld [vmem:[#allocation6 + $0x320] sm:$0xff]
    %v189 = vld [vmem:[#allocation6 + $0x328] sm:$0xff]
    %v190 = vld [vmem:[#allocation6 + $0x330] sm:$0xff]
    %v191 = vld [vmem:[#allocation6 + $0x338] sm:$0xff]
    %v192 = vld [vmem:[#allocation6 + $0x340] sm:$0xff]
    %v193 = vld [vmem:[#allocation6 + $0x348] sm:$0xff]
    %v194 = vld [vmem:[#allocation6 + $0x350] sm:$0xff]
    %v195 = vld [vmem:[#allocation6 + $0x358] sm:$0xff]
    %v196 = vld [vmem:[#allocation6 + $0x360] sm:$0xff]
    %v197 = vld [vmem:[#allocation6 + $0x368] sm:$0xff]
    %v198 = vld [vmem:[#allocation6 + $0x370] sm:$0xff]
    %v199 = vld [vmem:[#allocation6 + $0x378] sm:$0xff]
    %v200 = vld [vmem:[#allocation6 + $0x380] sm:$0xff]
    %v201 = vld [vmem:[#allocation6 + $0x388] sm:$0xff]
    %v202 = vld [vmem:[#allocation6 + $0x390] sm:$0xff]
    %v203 = vld [vmem:[#allocation6 + $0x398] sm:$0xff]
    %v204 = vld [vmem:[#allocation6 + $0x3a0] sm:$0xff]
    %v205 = vld [vmem:[#allocation6 + $0x3a8] sm:$0xff]
    %v206 = vld [vmem:[#allocation6 + $0x3b0] sm:$0xff]
    %v207 = vld [vmem:[#allocation6 + $0x3b8] sm:$0xff]
    %v208 = vld [vmem:[#allocation6 + $0x3c0] sm:$0xff]
    %v209 = vld [vmem:[#allocation6 + $0x3c8] sm:$0xff]
    %v210 = vld [vmem:[#allocation6 + $0x3d0] sm:$0xff]
    %v211 = vld [vmem:[#allocation6 + $0x3d8] sm:$0xff]
    %v212 = vld [vmem:[#allocation6 + $0x3e0] sm:$0xff]
    %v213 = vld [vmem:[#allocation6 + $0x3e8] sm:$0xff]
    %v214 = vld [vmem:[#allocation6 + $0x3f0] sm:$0xff]
    %v215 = vld [vmem:[#allocation6 + $0x3f8] sm:$0xff]
    %v216 = vld [vmem:[#allocation9] sm:$0xff]
    %v217 = vld [vmem:[#allocation9 + $0x8] sm:$0xff]
    %v218 = vld [vmem:[#allocation9 + $0x10] sm:$0xff]
    %v219 = vld [vmem:[#allocation9 + $0x18] sm:$0xff]
    %v220 = vld [vmem:[#allocation9 + $0x20] sm:$0xff]
    %v221 = vld [vmem:[#allocation9 + $0x28] sm:$0xff]
    %v222 = vld [vmem:[#allocation9 + $0x30] sm:$0xff]
    %v223 = vld [vmem:[#allocation9 + $0x38] sm:$0xff]
    %v224 = vld [vmem:[#allocation9 + $0x40] sm:$0xff]
    %v225 = vld [vmem:[#allocation9 + $0x48] sm:$0xff]
    %v226 = vld [vmem:[#allocation9 + $0x50] sm:$0xff]
    %v227 = vld [vmem:[#allocation9 + $0x58] sm:$0xff]
    %v228 = vld [vmem:[#allocation9 + $0x60] sm:$0xff]
    %v229 = vld [vmem:[#allocation9 + $0x68] sm:$0xff]
    %v230 = vld [vmem:[#allocation9 + $0x70] sm:$0xff]
    %v231 = vld [vmem:[#allocation9 + $0x78] sm:$0xff]
    %v232 = vld [vmem:[#allocation9 + $0x80] sm:$0xff]
    %v233 = vld [vmem:[#allocation9 + $0x88] sm:$0xff]
    %v234 = vld [vmem:[#allocation9 + $0x90] sm:$0xff]
    %v235 = vld [vmem:[#allocation9 + $0x98] sm:$0xff]
    %v236 = vld [vmem:[#allocation9 + $0xa0] sm:$0xff]
    %v237 = vld [vmem:[#allocation9 + $0xa8] sm:$0xff]
    %v238 = vld [vmem:[#allocation9 + $0xb0] sm:$0xff]
    %v239 = vld [vmem:[#allocation9 + $0xb8] sm:$0xff]
    %v240 = vld [vmem:[#allocation9 + $0xc0] sm:$0xff]
    %v241 = vld [vmem:[#allocation9 + $0xc8] sm:$0xff]
    %v242 = vld [vmem:[#allocation9 + $0xd0] sm:$0xff]
    %v243 = vld [vmem:[#allocation9 + $0xd8] sm:$0xff]
    %v244 = vld [vmem:[#allocation9 + $0xe0] sm:$0xff]
    %v245 = vld [vmem:[#allocation9 + $0xe8] sm:$0xff]
    %v246 = vld [vmem:[#allocation9 + $0xf0] sm:$0xff]
    %v247 = vld [vmem:[#allocation9 + $0xf8] sm:$0xff]
    %v248 = vld [vmem:[#allocation9 + $0x100] sm:$0xff]
    %v249 = vld [vmem:[#allocation9 + $0x108] sm:$0xff]
    %v250 = vld [vmem:[#allocation9 + $0x110] sm:$0xff]
    %v251 = vld [vmem:[#allocation9 + $0x118] sm:$0xff]
    %v252 = vld [vmem:[#allocation9 + $0x120] sm:$0xff]
    %v253 = vld [vmem:[#allocation9 + $0x128] sm:$0xff]
    %v254 = vld [vmem:[#allocation9 + $0x130] sm:$0xff]
    %v255 = vld [vmem:[#allocation9 + $0x138] sm:$0xff]
    %v256 = vld [vmem:[#allocation9 + $0x140] sm:$0xff]
    %v257 = vld [vmem:[#allocation9 + $0x148] sm:$0xff]
    %v258 = vld [vmem:[#allocation9 + $0x150] sm:$0xff]
    %v259 = vld [vmem:[#allocation9 + $0x158] sm:$0xff]
    %v260 = vld [vmem:[#allocation9 + $0x160] sm:$0xff]
    %v261 = vld [vmem:[#allocation9 + $0x168] sm:$0xff]
    %v262 = vld [vmem:[#allocation9 + $0x170] sm:$0xff]
    %v263 = vld [vmem:[#allocation9 + $0x178] sm:$0xff]
    %v264 = vld [vmem:[#allocation9 + $0x180] sm:$0xff]
    %v265 = vld [vmem:[#allocation9 + $0x188] sm:$0xff]
    %v266 = vld [vmem:[#allocation9 + $0x190] sm:$0xff]
    %v267 = vld [vmem:[#allocation9 + $0x198] sm:$0xff]
    %v268 = vld [vmem:[#allocation9 + $0x1a0] sm:$0xff]
    %v269 = vld [vmem:[#allocation9 + $0x1a8] sm:$0xff]
    %v270 = vld [vmem:[#allocation9 + $0x1b0] sm:$0xff]
    %v271 = vld [vmem:[#allocation9 + $0x1b8] sm:$0xff]
    %v272 = vld [vmem:[#allocation9 + $0x1c0] sm:$0xff]
    %v273 = vld [vmem:[#allocation9 + $0x1c8] sm:$0xff]
    %v274 = vld [vmem:[#allocation9 + $0x1d0] sm:$0xff]
    %v275 = vld [vmem:[#allocation9 + $0x1d8] sm:$0xff]
    %v276 = vld [vmem:[#allocation9 + $0x1e0] sm:$0xff]
    %v277 = vld [vmem:[#allocation9 + $0x1e8] sm:$0xff]
    %v278 = vld [vmem:[#allocation9 + $0x1f0] sm:$0xff]
    %v279 = vld [vmem:[#allocation9 + $0x1f8] sm:$0xff]
    %v280 = vld [vmem:[#allocation9 + $0x200] sm:$0xff]
    %v281 = vld [vmem:[#allocation9 + $0x208] sm:$0xff]
    %v282 = vld [vmem:[#allocation9 + $0x210] sm:$0xff]
    %v283 = vld [vmem:[#allocation9 + $0x218] sm:$0xff]
    %v284 = vld [vmem:[#allocation9 + $0x220] sm:$0xff]
    %v285 = vld [vmem:[#allocation9 + $0x228] sm:$0xff]
    %v286 = vld [vmem:[#allocation9 + $0x230] sm:$0xff]
    %v287 = vld [vmem:[#allocation9 + $0x238] sm:$0xff]
    %v288 = vld [vmem:[#allocation9 + $0x240] sm:$0xff]
    %v289 = vld [vmem:[#allocation9 + $0x248] sm:$0xff]
    %v290 = vld [vmem:[#allocation9 + $0x250] sm:$0xff]
    %v291 = vld [vmem:[#allocation9 + $0x258] sm:$0xff]
    %v292 = vld [vmem:[#allocation9 + $0x260] sm:$0xff]
    %v293 = vld [vmem:[#allocation9 + $0x268] sm:$0xff]
    %v294 = vld [vmem:[#allocation9 + $0x270] sm:$0xff]
    %v295 = vld [vmem:[#allocation9 + $0x278] sm:$0xff]
    %v296 = vld [vmem:[#allocation9 + $0x280] sm:$0xff]
    %v297 = vld [vmem:[#allocation9 + $0x288] sm:$0xff]
    %v298 = vld [vmem:[#allocation9 + $0x290] sm:$0xff]
    %v299 = vld [vmem:[#allocation9 + $0x298] sm:$0xff]
    %v300 = vld [vmem:[#allocation9 + $0x2a0] sm:$0xff]
    %v301 = vld [vmem:[#allocation9 + $0x2a8] sm:$0xff]
    %v302 = vld [vmem:[#allocation9 + $0x2b0] sm:$0xff]
    %v303 = vld [vmem:[#allocation9 + $0x2b8] sm:$0xff]
    %v304 = vld [vmem:[#allocation9 + $0x2c0] sm:$0xff]
    %v305 = vld [vmem:[#allocation9 + $0x2c8] sm:$0xff]
    %v306 = vld [vmem:[#allocation9 + $0x2d0] sm:$0xff]
    %v307 = vld [vmem:[#allocation9 + $0x2d8] sm:$0xff]
    %v308 = vld [vmem:[#allocation9 + $0x2e0] sm:$0xff]
    %v309 = vld [vmem:[#allocation9 + $0x2e8] sm:$0xff]
    %v310 = vld [vmem:[#allocation9 + $0x2f0] sm:$0xff]
    %v311 = vld [vmem:[#allocation9 + $0x2f8] sm:$0xff]
    %v312 = vld [vmem:[#allocation9 + $0x300] sm:$0xff]
    %v313 = vld [vmem:[#allocation9 + $0x308] sm:$0xff]
    %v314 = vld [vmem:[#allocation9 + $0x310] sm:$0xff]
    %v315 = vld [vmem:[#allocation9 + $0x318] sm:$0xff]
    %v316 = vld [vmem:[#allocation9 + $0x320] sm:$0xff]
    %v317 = vld [vmem:[#allocation9 + $0x328] sm:$0xff]
    %v318 = vld [vmem:[#allocation9 + $0x330] sm:$0xff]
    %v319 = vld [vmem:[#allocation9 + $0x338] sm:$0xff]
    %v320 = vld [vmem:[#allocation9 + $0x340] sm:$0xff]
    %v321 = vld [vmem:[#allocation9 + $0x348] sm:$0xff]
    %v322 = vld [vmem:[#allocation9 + $0x350] sm:$0xff]
    %v323 = vld [vmem:[#allocation9 + $0x358] sm:$0xff]
    %v324 = vld [vmem:[#allocation9 + $0x360] sm:$0xff]
    %v325 = vld [vmem:[#allocation9 + $0x368] sm:$0xff]
    %v326 = vld [vmem:[#allocation9 + $0x370] sm:$0xff]
    %v327 = vld [vmem:[#allocation9 + $0x378] sm:$0xff]
    %v328 = vld [vmem:[#allocation9 + $0x380] sm:$0xff]
    %v329 = vld [vmem:[#allocation9 + $0x388] sm:$0xff]
    %v330 = vld [vmem:[#allocation9 + $0x390] sm:$0xff]
    %v331 = vld [vmem:[#allocation9 + $0x398] sm:$0xff]
    %v332 = vld [vmem:[#allocation9 + $0x3a0] sm:$0xff]
    %v333 = vld [vmem:[#allocation9 + $0x3a8] sm:$0xff]
    %v334 = vld [vmem:[#allocation9 + $0x3b0] sm:$0xff]
    %v335 = vld [vmem:[#allocation9 + $0x3b8] sm:$0xff]
    %v336 = vld [vmem:[#allocation9 + $0x3c0] sm:$0xff]
    %v337 = vld [vmem:[#allocation9 + $0x3c8] sm:$0xff]
    %v338 = vld [vmem:[#allocation9 + $0x3d0] sm:$0xff]
    %v339 = vld [vmem:[#allocation9 + $0x3d8] sm:$0xff]
    %v340 = vld [vmem:[#allocation9 + $0x3e0] sm:$0xff]
    %v341 = vld [vmem:[#allocation9 + $0x3e8] sm:$0xff]
    %v342 = vld [vmem:[#allocation9 + $0x3f0] sm:$0xff]
    %v343 = vld [vmem:[#allocation9 + $0x3f8] sm:$0xff]
    %v344 = vld [vmem:[#allocation8] sm:$0xf]
    %v346 = vperm.slane %v344, 0
    %v347 = vperm.slane %v344, 1
    %v348 = vperm.slane %v344, 2
    %v349 = vperm.slane %v344, 3
    %v354 = vld [vmem:[%s4] sm:$0xf]
    %v356 = vperm.slane %v354, 0
    %v357 = vperm.slane %v354, 1
    %v358 = vperm.slane %v354, 2
    %v359 = vperm.slane %v354, 3
    %v364 = vld [vmem:[#allocation3] sm:$0xff]
    %365 = vmatpush.msra.mxu0 %v148
    %366 = vmatpush.msra.mxu0 %v144
    %367 = vmatpush.msra.mxu0 %v140
    %368 = vmatpush.msra.mxu0 %v136
    %369 = vmatpush.msra.mxu0 %v132
    %370 = vmatpush.msra.mxu0 %v128
    %371 = vmatpush.msra.mxu0 %v124
    %372 = vmatpush.msra.mxu0 %v120
    %373 = vmatpush.msra.mxu0 %v116
    %374 = vmatpush.msra.mxu0 %v112
    %375 = vmatpush.msra.mxu0 %v108
    %376 = vmatpush.msra.mxu0 %v104
    %377 = vmatpush.msra.mxu0 %v100
    %378 = vmatpush.msra.mxu0 %v96
    %379 = vmatpush.msra.mxu0 %v92
    %380 = vmatpush.msra.mxu0 %v88
    %381 = vmatmul.f32.gmra.mxu0 0.0
    %v382 = vpop.f32.mrf.mxu0
    %v383 = vadd.f32 %v346, %v382
    %384 = vdwg.mxu0
    %385 = vmatpush.msra.mxu0 %v212
    %386 = vmatpush.msra.mxu0 %v208
    %387 = vmatpush.msra.mxu0 %v204
    %388 = vmatpush.msra.mxu0 %v200
    %389 = vmatpush.msra.mxu0 %v196
    %390 = vmatpush.msra.mxu0 %v192
    %391 = vmatpush.msra.mxu0 %v188
    %392 = vmatpush.msra.mxu0 %v184
    %393 = vmatpush.msra.mxu0 %v180
    %394 = vmatpush.msra.mxu0 %v176
    %395 = vmatpush.msra.mxu0 %v172
    %396 = vmatpush.msra.mxu0 %v168
    %397 = vmatpush.msra.mxu0 %v164
    %398 = vmatpush.msra.mxu0 %v160
    %399 = vmatpush.msra.mxu0 %v156
    %400 = vmatpush.msra.mxu0 %v152
    %401 = vmatmul.f32.gmra.mxu0 %v364
    %v402 = vpop.f32.mrf.mxu0
    %v403 = vadd.f32 %v383, %v402
    %404 = vdwg.mxu0
    %405 = vmatpush.msra.mxu0 %v149
    %406 = vmatpush.msra.mxu0 %v145
    %407 = vmatpush.msra.mxu0 %v141
    %408 = vmatpush.msra.mxu0 %v137
    %409 = vmatpush.msra.mxu0 %v133
    %410 = vmatpush.msra.mxu0 %v129
    %411 = vmatpush.msra.mxu0 %v125
    %412 = vmatpush.msra.mxu0 %v121
    %413 = vmatpush.msra.mxu0 %v117
    %414 = vmatpush.msra.mxu0 %v113
    %415 = vmatpush.msra.mxu0 %v109
    %416 = vmatpush.msra.mxu0 %v105
    %417 = vmatpush.msra.mxu0 %v101
    %418 = vmatpush.msra.mxu0 %v97
    %419 = vmatpush.msra.mxu0 %v93
    %420 = vmatpush.msra.mxu0 %v89
    %421 = vmatmul.f32.gmra.mxu0 0.0
    %v422 = vpop.f32.mrf.mxu0
    %v423 = vadd.f32 %v347, %v422
    %424 = vdwg.mxu0
    %425 = vmatpush.msra.mxu0 %v213
    %426 = vmatpush.msra.mxu0 %v209
    %427 = vmatpush.msra.mxu0 %v205
    %428 = vmatpush.msra.mxu0 %v201
    %429 = vmatpush.msra.mxu0 %v197
    %430 = vmatpush.msra.mxu0 %v193
    %431 = vmatpush.msra.mxu0 %v189
    %432 = vmatpush.msra.mxu0 %v185
    %433 = vmatpush.msra.mxu0 %v181
    %434 = vmatpush.msra.mxu0 %v177
    %435 = vmatpush.msra.mxu0 %v173
    %436 = vmatpush.msra.mxu0 %v169
    %437 = vmatpush.msra.mxu0 %v165
    %438 = vmatpush.msra.mxu0 %v161
    %439 = vmatpush.msra.mxu0 %v157
    %440 = vmatpush.msra.mxu0 %v153
    %441 = vmatmul.f32.gmra.mxu0 %v364
    %v442 = vpop.f32.mrf.mxu0
    %v443 = vadd.f32 %v423, %v442
    %444 = vdwg.mxu0
    %445 = vmatpush.msra.mxu0 %v150
    %446 = vmatpush.msra.mxu0 %v146
    %447 = vmatpush.msra.mxu0 %v142
    %448 = vmatpush.msra.mxu0 %v138
    %449 = vmatpush.msra.mxu0 %v134
    %450 = vmatpush.msra.mxu0 %v130
    %451 = vmatpush.msra.mxu0 %v126
    %452 = vmatpush.msra.mxu0 %v122
    %453 = vmatpush.msra.mxu0 %v118
    %454 = vmatpush.msra.mxu0 %v114
    %455 = vmatpush.msra.mxu0 %v110
    %456 = vmatpush.msra.mxu0 %v106
    %457 = vmatpush.msra.mxu0 %v102
    %458 = vmatpush.msra.mxu0 %v98
    %459 = vmatpush.msra.mxu0 %v94
    %460 = vmatpush.msra.mxu0 %v90
    %461 = vmatmul.f32.gmra.mxu0 0.0
    %v462 = vpop.f32.mrf.mxu0
    %v463 = vadd.f32 %v348, %v462
    %464 = vdwg.mxu0
    %465 = vmatpush.msra.mxu0 %v214
    %466 = vmatpush.msra.mxu0 %v210
    %467 = vmatpush.msra.mxu0 %v206
    %468 = vmatpush.msra.mxu0 %v202
    %469 = vmatpush.msra.mxu0 %v198
    %470 = vmatpush.msra.mxu0 %v194
    %471 = vmatpush.msra.mxu0 %v190
    %472 = vmatpush.msra.mxu0 %v186
    %473 = vmatpush.msra.mxu0 %v182
    %474 = vmatpush.msra.mxu0 %v178
    %475 = vmatpush.msra.mxu0 %v174
    %476 = vmatpush.msra.mxu0 %v170
    %477 = vmatpush.msra.mxu0 %v166
    %478 = vmatpush.msra.mxu0 %v162
    %479 = vmatpush.msra.mxu0 %v158
    %480 = vmatpush.msra.mxu0 %v154
    %481 = vmatmul.f32.gmra.mxu0 %v364
    %v482 = vpop.f32.mrf.mxu0
    %v483 = vadd.f32 %v463, %v482
    %484 = vdwg.mxu0
    %485 = vmatpush.msra.mxu0 %v151
    %486 = vmatpush.msra.mxu0 %v147
    %487 = vmatpush.msra.mxu0 %v143
    %488 = vmatpush.msra.mxu0 %v139
    %489 = vmatpush.msra.mxu0 %v135
    %490 = vmatpush.msra.mxu0 %v131
    %491 = vmatpush.msra.mxu0 %v127
    %492 = vmatpush.msra.mxu0 %v123
    %493 = vmatpush.msra.mxu0 %v119
    %494 = vmatpush.msra.mxu0 %v115
    %495 = vmatpush.msra.mxu0 %v111
    %496 = vmatpush.msra.mxu0 %v107
    %497 = vmatpush.msra.mxu0 %v103
    %498 = vmatpush.msra.mxu0 %v99
    %499 = vmatpush.msra.mxu0 %v95
    %500 = vmatpush.msra.mxu0 %v91
    %501 = vmatmul.f32.gmra.mxu0 0.0
    %v502 = vpop.f32.mrf.mxu0
    %v503 = vadd.f32 %v349, %v502
    %504 = vdwg.mxu0
    %505 = vmatpush.msra.mxu0 %v215
    %506 = vmatpush.msra.mxu0 %v211
    %507 = vmatpush.msra.mxu0 %v207
    %508 = vmatpush.msra.mxu0 %v203
    %509 = vmatpush.msra.mxu0 %v199
    %510 = vmatpush.msra.mxu0 %v195
    %511 = vmatpush.msra.mxu0 %v191
    %512 = vmatpush.msra.mxu0 %v187
    %513 = vmatpush.msra.mxu0 %v183
    %514 = vmatpush.msra.mxu0 %v179
    %515 = vmatpush.msra.mxu0 %v175
    %516 = vmatpush.msra.mxu0 %v171
    %517 = vmatpush.msra.mxu0 %v167
    %518 = vmatpush.msra.mxu0 %v163
    %519 = vmatpush.msra.mxu0 %v159
    %520 = vmatpush.msra.mxu0 %v155
    %521 = vmatmul.f32.gmra.mxu0 %v364
    %v522 = vpop.f32.mrf.mxu0
    %v523 = vadd.f32 %v503, %v522
    %524 = vdwg.mxu0
    %v525 = vxor.u32 %v403, 2147483648
    %v526 = vmul.f32 %v525, 1.442695
    %v527 = vpow.pop %v526
    %v528 = vadd.f32 %v527, 1.0
    %v529 = vrcp.pop %v528
    %v530 = vmul.f32 %v528, %v529
    %v531 = vsub.f32 1.0, %v530
    %v532 = vmul.f32 %v529, %v531
    %v533 = vadd.f32 %v529, %v532
    %vm534 = vweird.f32 %v528
    %vm535 = vweird.f32 %v529
    %vm536 = vmor %vm534, %vm535
    %v537 = vsel %vm536, %v529, %v533
    %v538 = vand.u32 2147483647, %v528
    %vm539 = vcmp.eq.f32.partialorder %v538, 8.507059e+37
    %v540 = vand.u32 %v528, 2147483648
    %v541 = vor.u32 1.1754944e-38, %v540
    %v542 = vsel %vm539, %v541, %v537
    %v543 = vmul.f32 1.0, %v542
    %v544 = vxor.u32 %v443, 2147483648
    %v545 = vmul.f32 %v544, 1.442695
    %v546 = vpow.pop %v545
    %v547 = vadd.f32 %v546, 1.0
    %v548 = vrcp.pop %v547
    %v549 = vmul.f32 %v547, %v548
    %v550 = vsub.f32 1.0, %v549
    %v551 = vmul.f32 %v548, %v550
    %v552 = vadd.f32 %v548, %v551
    %vm553 = vweird.f32 %v547
    %vm554 = vweird.f32 %v548
    %vm555 = vmor %vm553, %vm554
    %v556 = vsel %vm555, %v548, %v552
    %v557 = vand.u32 2147483647, %v547
    %vm558 = vcmp.eq.f32.partialorder %v557, 8.507059e+37
    %v559 = vand.u32 %v547, 2147483648
    %v560 = vor.u32 1.1754944e-38, %v559
    %v561 = vsel %vm558, %v560, %v556
    %v562 = vmul.f32 1.0, %v561
    %v563 = vmul.f32 %v543, %v523
    %v564 = vadd.f32 %v483, %v563
    %v565 = vtanh.pop %v564
    %v566 = vsub.f32 1.0, %v562
    %v567 = vmul.f32 %v566, %v565
    %v568 = vmul.f32 %v562, 0.0
    %v569 = vadd.f32 %v567, %v568
    %570 = vmatpush.msra.mxu0 %v276
    %571 = vmatpush.msra.mxu0 %v272
    %572 = vmatpush.msra.mxu0 %v268
    %573 = vmatpush.msra.mxu0 %v264
    %574 = vmatpush.msra.mxu0 %v260
    %575 = vmatpush.msra.mxu0 %v256
    %576 = vmatpush.msra.mxu0 %v252
    %577 = vmatpush.msra.mxu0 %v248
    %578 = vmatpush.msra.mxu0 %v244
    %579 = vmatpush.msra.mxu0 %v240
    %580 = vmatpush.msra.mxu0 %v236
    %581 = vmatpush.msra.mxu0 %v232
    %582 = vmatpush.msra.mxu0 %v228
    %583 = vmatpush.msra.mxu0 %v224
    %584 = vmatpush.msra.mxu0 %v220
    %585 = vmatpush.msra.mxu0 %v216
    %586 = vmatmul.f32.gmra.mxu0 0.0
    %v587 = vpop.f32.mrf.mxu0
    %v588 = vadd.f32 %v356, %v587
    %589 = vdwg.mxu0
    %590 = vmatpush.msra.mxu0 %v340
    %591 = vmatpush.msra.mxu0 %v336
    %592 = vmatpush.msra.mxu0 %v332
    %593 = vmatpush.msra.mxu0 %v328
    %594 = vmatpush.msra.mxu0 %v324
    %595 = vmatpush.msra.mxu0 %v320
    %596 = vmatpush.msra.mxu0 %v316
    %597 = vmatpush.msra.mxu0 %v312
    %598 = vmatpush.msra.mxu0 %v308
    %599 = vmatpush.msra.mxu0 %v304
    %600 = vmatpush.msra.mxu0 %v300
    %601 = vmatpush.msra.mxu0 %v296
    %602 = vmatpush.msra.mxu0 %v292
    %603 = vmatpush.msra.mxu0 %v288
    %604 = vmatpush.msra.mxu0 %v284
    %605 = vmatpush.msra.mxu0 %v280
    %606 = vmatmul.f32.gmra.mxu0 %v569
    %v607 = vpop.f32.mrf.mxu0
    %v608 = vadd.f32 %v588, %v607
    %609 = vdwg.mxu0
    %610 = vmatpush.msra.mxu0 %v277
    %611 = vmatpush.msra.mxu0 %v273
    %612 = vmatpush.msra.mxu0 %v269
    %613 = vmatpush.msra.mxu0 %v265
    %614 = vmatpush.msra.mxu0 %v261
    %615 = vmatpush.msra.mxu0 %v257
    %616 = vmatpush.msra.mxu0 %v253
    %617 = vmatpush.msra.mxu0 %v249
    %618 = vmatpush.msra.mxu0 %v245
    %619 = vmatpush.msra.mxu0 %v241
    %620 = vmatpush.msra.mxu0 %v237
    %621 = vmatpush.msra.mxu0 %v233
    %622 = vmatpush.msra.mxu0 %v229
    %623 = vmatpush.msra.mxu0 %v225
    %624 = vmatpush.msra.mxu0 %v221
    %625 = vmatpush.msra.mxu0 %v217
    %626 = vmatmul.f32.gmra.mxu0 0.0
    %v627 = vpop.f32.mrf.mxu0
    %v628 = vadd.f32 %v357, %v627
    %629 = vdwg.mxu0
    %630 = vmatpush.msra.mxu0 %v341
    %631 = vmatpush.msra.mxu0 %v337
    %632 = vmatpush.msra.mxu0 %v333
    %633 = vmatpush.msra.mxu0 %v329
    %634 = vmatpush.msra.mxu0 %v325
    %635 = vmatpush.msra.mxu0 %v321
    %636 = vmatpush.msra.mxu0 %v317
    %637 = vmatpush.msra.mxu0 %v313
    %638 = vmatpush.msra.mxu0 %v309
    %639 = vmatpush.msra.mxu0 %v305
    %640 = vmatpush.msra.mxu0 %v301
    %641 = vmatpush.msra.mxu0 %v297
    %642 = vmatpush.msra.mxu0 %v293
    %643 = vmatpush.msra.mxu0 %v289
    %644 = vmatpush.msra.mxu0 %v285
    %645 = vmatpush.msra.mxu0 %v281
    %646 = vmatmul.f32.gmra.mxu0 %v569
    %v647 = vpop.f32.mrf.mxu0
    %v648 = vadd.f32 %v628, %v647
    %649 = vdwg.mxu0
    %650 = vmatpush.msra.mxu0 %v278
    %651 = vmatpush.msra.mxu0 %v274
    %652 = vmatpush.msra.mxu0 %v270
    %653 = vmatpush.msra.mxu0 %v266
    %654 = vmatpush.msra.mxu0 %v262
    %655 = vmatpush.msra.mxu0 %v258
    %656 = vmatpush.msra.mxu0 %v254
    %657 = vmatpush.msra.mxu0 %v250
    %658 = vmatpush.msra.mxu0 %v246
    %659 = vmatpush.msra.mxu0 %v242
    %660 = vmatpush.msra.mxu0 %v238
    %661 = vmatpush.msra.mxu0 %v234
    %662 = vmatpush.msra.mxu0 %v230
    %663 = vmatpush.msra.mxu0 %v226
    %664 = vmatpush.msra.mxu0 %v222
    %665 = vmatpush.msra.mxu0 %v218
    %666 = vmatmul.f32.gmra.mxu0 0.0
    %v667 = vpop.f32.mrf.mxu0
    %v668 = vadd.f32 %v358, %v667
    %669 = vdwg.mxu0
    %670 = vmatpush.msra.mxu0 %v342
    %671 = vmatpush.msra.mxu0 %v338
    %672 = vmatpush.msra.mxu0 %v334
    %673 = vmatpush.msra.mxu0 %v330
    %674 = vmatpush.msra.mxu0 %v326
    %675 = vmatpush.msra.mxu0 %v322
    %676 = vmatpush.msra.mxu0 %v318
    %677 = vmatpush.msra.mxu0 %v314
    %678 = vmatpush.msra.mxu0 %v310
    %679 = vmatpush.msra.mxu0 %v306
    %680 = vmatpush.msra.mxu0 %v302
    %681 = vmatpush.msra.mxu0 %v298
    %682 = vmatpush.msra.mxu0 %v294
    %683 = vmatpush.msra.mxu0 %v290
    %684 = vmatpush.msra.mxu0 %v286
    %685 = vmatpush.msra.mxu0 %v282
    %686 = vmatmul.f32.gmra.mxu0 %v569
    %v687 = vpop.f32.mrf.mxu0
    %v688 = vadd.f32 %v668, %v687
    %689 = vdwg.mxu0
    %690 = vmatpush.msra.mxu0 %v279
    %691 = vmatpush.msra.mxu0 %v275
    %692 = vmatpush.msra.mxu0 %v271
    %693 = vmatpush.msra.mxu0 %v267
    %694 = vmatpush.msra.mxu0 %v263
    %695 = vmatpush.msra.mxu0 %v259
    %696 = vmatpush.msra.mxu0 %v255
    %697 = vmatpush.msra.mxu0 %v251
    %698 = vmatpush.msra.mxu0 %v247
    %699 = vmatpush.msra.mxu0 %v243
    %700 = vmatpush.msra.mxu0 %v239
    %701 = vmatpush.msra.mxu0 %v235
    %702 = vmatpush.msra.mxu0 %v231
    %703 = vmatpush.msra.mxu0 %v227
    %704 = vmatpush.msra.mxu0 %v223
    %705 = vmatpush.msra.mxu0 %v219
    %706 = vmatmul.f32.gmra.mxu0 0.0
    %v707 = vpop.f32.mrf.mxu0
    %v708 = vadd.f32 %v359, %v707
    %709 = vdwg.mxu0
    %710 = vmatpush.msra.mxu0 %v343
    %711 = vmatpush.msra.mxu0 %v339
    %712 = vmatpush.msra.mxu0 %v335
    %713 = vmatpush.msra.mxu0 %v331
    %714 = vmatpush.msra.mxu0 %v327
    %715 = vmatpush.msra.mxu0 %v323
    %716 = vmatpush.msra.mxu0 %v319
    %717 = vmatpush.msra.mxu0 %v315
    %718 = vmatpush.msra.mxu0 %v311
    %719 = vmatpush.msra.mxu0 %v307
    %720 = vmatpush.msra.mxu0 %v303
    %721 = vmatpush.msra.mxu0 %v299
    %722 = vmatpush.msra.mxu0 %v295
    %723 = vmatpush.msra.mxu0 %v291
    %724 = vmatpush.msra.mxu0 %v287
    %725 = vmatpush.msra.mxu0 %v283
    %726 = vmatmul.f32.gmra.mxu0 %v569
    %v727 = vpop.f32.mrf.mxu0
    %v728 = vadd.f32 %v708, %v727
    %729 = vdwg.mxu0
    %v730 = vxor.u32 %v608, 2147483648
    %v731 = vmul.f32 %v730, 1.442695
    %v732 = vpow.pop %v731
    %v733 = vadd.f32 %v732, 1.0
    %v734 = vrcp.pop %v733
    %v735 = vmul.f32 %v733, %v734
    %v736 = vsub.f32 1.0, %v735
    %v737 = vmul.f32 %v734, %v736
    %v738 = vadd.f32 %v734, %v737
    %vm739 = vweird.f32 %v733
    %vm740 = vweird.f32 %v734
    %vm741 = vmor %vm739, %vm740
    %v742 = vsel %vm741, %v734, %v738
    %v743 = vand.u32 2147483647, %v733
    %vm744 = vcmp.eq.f32.partialorder %v743, 8.507059e+37
    %v745 = vand.u32 %v733, 2147483648
    %v746 = vor.u32 1.1754944e-38, %v745
    %v747 = vsel %vm744, %v746, %v742
    %v748 = vmul.f32 1.0, %v747
    %v749 = vxor.u32 %v648, 2147483648
    %v750 = vmul.f32 %v749, 1.442695
    %v751 = vpow.pop %v750
    %v752 = vadd.f32 %v751, 1.0
    %v753 = vrcp.pop %v752
    %v754 = vmul.f32 %v752, %v753
    %v755 = vsub.f32 1.0, %v754
    %v756 = vmul.f32 %v753, %v755
    %v757 = vadd.f32 %v753, %v756
    %vm758 = vweird.f32 %v752
    %vm759 = vweird.f32 %v753
    %vm760 = vmor %vm758, %vm759
    %v761 = vsel %vm760, %v753, %v757
    %v762 = vand.u32 2147483647, %v752
    %vm763 = vcmp.eq.f32.partialorder %v762, 8.507059e+37
    %v764 = vand.u32 %v752, 2147483648
    %v765 = vor.u32 1.1754944e-38, %v764
    %v766 = vsel %vm763, %v765, %v761
    %v767 = vmul.f32 1.0, %v766
    %v768 = vmul.f32 %v748, %v728
    %v769 = vadd.f32 %v688, %v768
    %v770 = vtanh.pop %v769
    %v771 = vsub.f32 1.0, %v767
    %v772 = vmul.f32 %v771, %v770
    %v773 = vmul.f32 %v767, 0.0
    %v774 = vadd.f32 %v772, %v773
    %v775 = vld [vmem:[%s5] sm:$0x1]
    %v777 = vperm.slane %v775, 0
    %v779 = vmul.f32 %v774, %v777
    %vm780 = vcmask 1047559
    %v781 = vsel %vm780, %v779, 0.0
    %782 = vadd.xlane.f32.xlu0 %v781
    %v783 = vpop.xlane.xlu0 %782
    %v784 = vld [vmem:[#allocation2] sm:$0x1]
    %v786 = vperm.slane %v784, 0
    %v788 = vadd.f32 %v783, %v786
    %vm789 = vcmask 7175
    %790 = vst.msk [vmem:[#allocation11 - $0x7] sm:$0x80] %vm789, %v788
    // Predicated region
    $region46: #{tpu_custom_call.1} parent=1 // pred_check
      _
    $region47: #{tpu_custom_call.1} parent=1 // pred_check_branch
      %792 = sbr.rel (0) target = $region49
    $region48: #{tpu_custom_call.1} parent=1 // pred_region
      %794 = vsyncadd [#allocation5], 0
      %s796 = sshll.u32 [#allocation11], 4
      %s797 = int_to_ptr.vmem [resolvable:$true] %s796
      %s798 = sshll.u32 %s7, 4
      %s799 = int_to_ptr.hbm [resolvable:$true] %s798
      %801 = dma.vmem_to_hbm [thread:$0]  %s797, 16, %s799, [#allocation5]
    $region49: #{tpu_custom_call.1} parent=1 // pred_fallthru
      _
    // Predicated region
    $region50: #{tpu_custom_call.1} parent=1 // pred_check
      _
    $region51: #{tpu_custom_call.1} parent=1 // pred_check_branch
      %803 = sbr.rel (0) target = $region53
    $region52: #{tpu_custom_call.1} parent=1 // pred_region
      %805 = dma.done [#allocation5], 16
    $region53: #{tpu_custom_call.1} parent=1 // pred_fallthru
      _
    %806 = vsyncpa [#allocation4], 1
    %807 = vsyncpa [#allocation7], 1
    %808 = vsyncpa [#allocation10], 1
    %809 = vsyncpa [#allocation5], 1

</llo_original>
